<compile_context>
chip_gen: v7x
topology: tpu7x:2x2x1
jax: 0.10.0
libtpu: 0.0.40
codegen_flags: <defaults>
</compile_context>

<pallas_src>
import functools

import jax
import jax.numpy as jnp
from jax import lax
from jax.experimental import pallas as pl
from jax.experimental.pallas import tpu as pltpu


def _elasticface_kernel(e1_ref, e2_ref, side_ref, out_ref, *, s, batch, tile,
                        d_chunk):
    i = pl.program_id(0)
    tb, D = e1_ref.shape

    labels = side_ref[:, 0:1].astype(jnp.float32)   # (TB, 1)
    offset = side_ref[:, 1:2].astype(jnp.float32)   # (TB, 1) = labels * margin

    # --- cosine similarity along the feature axis (PyTorch eps = 1e-8) ---
    # Chunked accumulation over D keeps the f32 working set to a few vregs
    # instead of materializing three full (TB, D) f32 temporaries (matters on
    # v7x's 64 MiB VMEM).  Inputs are upcast per chunk; sums stay f32.
    dot = jnp.zeros((tb, 1), jnp.float32)
    n1sq = jnp.zeros((tb, 1), jnp.float32)
    n2sq = jnp.zeros((tb, 1), jnp.float32)
    for lo in range(0, D, d_chunk):
        hi = min(lo + d_chunk, D)
        a = e1_ref[:, lo:hi].astype(jnp.float32)
        b = e2_ref[:, lo:hi].astype(jnp.float32)
        dot = dot + jnp.sum(a * b, axis=-1, keepdims=True)
        n1sq = n1sq + jnp.sum(a * a, axis=-1, keepdims=True)
        n2sq = n2sq + jnp.sum(b * b, axis=-1, keepdims=True)

    # 1/(max(||a||,eps)*max(||b||,eps)) == rsqrt(max(||a||^2,eps^2)*max(||b||^2,eps^2))
    # rsqrt runs on the (otherwise idle) EUP slot; saves a sqrt and a divide.
    eps2 = jnp.float32(1e-16)
    inv_norm = lax.rsqrt(jnp.maximum(n1sq, eps2) * jnp.maximum(n2sq, eps2))
    cosine = dot * inv_norm

    # --- elastic margin + scale ---
    z = jnp.float32(s) * (cosine - offset)                      # logits (TB, 1)

    # --- binary cross entropy with logits (numerically stable form) ---
    per_example = (jnp.maximum(z, 0.0) - z * labels
                   + jnp.log1p(jnp.exp(-jnp.abs(z))))           # (TB, 1)

    # Mask rows past the true batch size (handles a partial final tile).
    rows = i * tile + lax.broadcasted_iota(jnp.int32, per_example.shape, 0)
    per_example = jnp.where(rows < batch, per_example, 0.0)

    partial = jnp.sum(per_example)
    # Lane-dense (1, 128) store: partial sum broadcast across all lanes.
    out_ref[...] = jnp.full((1, 128), partial, jnp.float32)


def _round_up(x, m):
    return ((x + m - 1) // m) * m


def _sublane_multiple(dtype):
    itemsize = jnp.dtype(dtype).itemsize
    return {4: 8, 2: 16, 1: 32}.get(itemsize, 8)


def _pick_batch_tile(B, D, dtype):
    """Batch-tile rows: dtype-aware sublane rounding (8/f32, 16/bf16, 32/i8),
    ~20 MiB double-buffered data footprint (fits v7x's 64 MiB VMEM), and at
    least 2 (ideally ~4) grid steps of >=512 rows once the batch is big enough
    so v7x's two TensorCores and the DMA pipeline are actually used."""
    itemsize = jnp.dtype(dtype).itemsize
    sub = _sublane_multiple(dtype)
    b_pad = _round_up(B, sub)

    # 2 embedding inputs x 2 pipeline buffers x tb x D under ~20 MiB.
    budget = 20 * 1024 * 1024
    tb = budget // max(1, 4 * D * itemsize)
    tb = max(sub, min(int(tb), 2048))
    tb = (tb // sub) * sub

    # Prefer >=2 grid steps (megacore sharding + DMA/compute overlap), target
    # ~4 steps, but never shrink tiles below 512 rows unless B itself is small.
    min_rows = min(b_pad, max(sub, 512))
    if b_pad >= 2 * min_rows:
        quarter = _round_up(pl.cdiv(b_pad, 4), sub)
        half = max(sub, (b_pad // 2 // sub) * sub)
        tb = min(tb, max(min_rows, quarter), max(min_rows, half))

    if tb >= b_pad:
        # Single tile: use the exact batch size (a full-extent block is always
        # a legal layout, even when B is not a sublane multiple).
        return B
    return max(sub, (tb // sub) * sub)


def _vmem_limit_bytes(tb, D, itemsize, d_chunk):
    # Real footprint: 2 inputs x 2 pipeline buffers, lane-padded side buffers,
    # per-chunk f32 working set, plus headroom.  Capped well under v7x's 64 MiB.
    emb = 2 * 2 * tb * D * itemsize
    side = 2 * tb * 128 * 4          # (tb, 2) lane-pads to (tb, 128) f32
    out = 2 * 128 * 4
    work = 3 * tb * d_chunk * 4
    limit = emb + side + out + work + (4 << 20)
    return int(min(max(limit, 8 << 20), 56 << 20))


def elasticface_loss(emb_1, emb_2, labels, *, s=64.0, m=0.35, std=0.0125,
                     margin_key=None, tile_rows=None):
    """JAX/Pallas equivalent of ElasticFaceLoss.forward.

    emb_1, emb_2: (B, D) float arrays (f32 or bf16 — streamed in native dtype)
    labels:       (B,)   array of {0., 1.}
    Returns a scalar float32 loss.
    """
    B, D = emb_1.shape
    assert emb_2.shape == (B, D)
    assert labels.shape == (B,)

    if margin_key is None:
        # PyTorch resamples the margin every forward; pass a fresh key per
        # call to reproduce training behaviour.
        margin_key = jax.random.PRNGKey(0)

    # margin ~ N(m, std), sampled per-example.
    margin = m + std * jax.random.normal(margin_key, (B,), dtype=jnp.float32)

    lab_f32 = labels.astype(jnp.float32)
    # Narrow (B, 2) side input (do NOT lane-pad it in HBM):
    # column 0 = labels (for the -z*y term), column 1 = labels * margin offset.
    side = jnp.stack([lab_f32, lab_f32 * margin], axis=1)       # (B, 2)

    dtype = emb_1.dtype
    itemsize = jnp.dtype(dtype).itemsize
    tb = _pick_batch_tile(B, D, dtype) if tile_rows is None else int(tile_rows)
    num_tiles = pl.cdiv(B, tb)
    d_chunk = min(D, 512)

    kernel = functools.partial(_elasticface_kernel, s=float(s), batch=B,
                               tile=tb, d_chunk=d_chunk)

    cost = pl.CostEstimate(
        flops=6 * B * D + 12 * B,
        transcendentals=3 * B,                       # rsqrt, exp, log1p per row
        bytes_accessed=2 * B * D * itemsize + 8 * B + num_tiles * 128 * 4,
    )

    partials = pl.pallas_call(
        kernel,
        out_shape=jax.ShapeDtypeStruct((1, num_tiles * 128), jnp.float32),
        grid=(num_tiles,),
        in_specs=[
            pl.BlockSpec((tb, D), lambda i: (i, 0)),
            pl.BlockSpec((tb, D), lambda i: (i, 0)),
            pl.BlockSpec((tb, 2), lambda i: (i, 0)),
        ],
        out_specs=pl.BlockSpec((1, 128), lambda i: (0, i)),
        compiler_params=pltpu.CompilerParams(
            dimension_semantics=("parallel",),
            vmem_limit_bytes=_vmem_limit_bytes(tb, D, itemsize, d_chunk),
        ),
        cost_estimate=cost,
    )(emb_1, emb_2, side)

    # Each tile broadcast its partial sum across 128 lanes; take lane 0 per tile.
    partial_sums = partials.reshape(num_tiles, 128)[:, 0]
    return jnp.sum(partial_sums) / jnp.float32(B)


def _reference_loss(emb_1, emb_2, labels, margin, s):
    # Pure-JAX reference for sanity checking the kernel (computed in f32).
    e1 = emb_1.astype(jnp.float32)
    e2 = emb_2.astype(jnp.float32)
    eps = 1e-8
    dot = jnp.sum(e1 * e2, axis=-1)
    n1 = jnp.maximum(jnp.linalg.norm(e1, axis=-1), eps)
    n2 = jnp.maximum(jnp.linalg.norm(e2, axis=-1), eps)
    cosine = dot / (n1 * n2)
    z = s * (cosine - labels.astype(jnp.float32) * margin)
    per = jnp.maximum(z, 0.0) - z * labels + jnp.log1p(jnp.exp(-jnp.abs(z)))
    return jnp.mean(per)


if __name__ == "__main__":
    key = jax.random.PRNGKey(0)
    k1, k2, k3, k4, k5, k6 = jax.random.split(key, 6)
    s, m, std = 64.0, 0.35, 0.0125

    # --- check 1: small f32 shapes, single tile ---
    B, D = 8, 32
    emb_1 = jax.random.normal(k1, (B, D), dtype=jnp.float32)
    emb_2 = jax.random.normal(k2, (B, D), dtype=jnp.float32)
    labels = jax.random.bernoulli(k3, 0.5, (B,)).astype(jnp.float32)
    margin_key = jax.random.PRNGKey(42)
    loss = jax.block_until_ready(
        elasticface_loss(emb_1, emb_2, labels, s=s, m=m, std=std,
                         margin_key=margin_key))
    margin = m + std * jax.random.normal(margin_key, (B,), dtype=jnp.float32)
    ref = _reference_loss(emb_1, emb_2, labels, margin, s)
    assert jnp.allclose(loss, ref, rtol=1e-5, atol=1e-5), (loss, ref)

    # --- check 2: bf16 inputs streamed natively (f32 accumulation in-kernel) ---
    Bb, Db = 40, 64
    e1b = jax.random.normal(k4, (Bb, Db), dtype=jnp.float32).astype(jnp.bfloat16)
    e2b = jax.random.normal(k5, (Bb, Db), dtype=jnp.float32).astype(jnp.bfloat16)
    labb = jax.random.bernoulli(k6, 0.5, (Bb,)).astype(jnp.float32)
    mk2 = jax.random.PRNGKey(7)
    loss_b = jax.block_until_ready(
        elasticface_loss(e1b, e2b, labb, s=s, m=m, std=std, margin_key=mk2))
    margin_b = m + std * jax.random.normal(mk2, (Bb,), dtype=jnp.float32)
    ref_b = _reference_loss(e1b, e2b, labb, margin_b, s)
    assert jnp.allclose(loss_b, ref_b, rtol=1e-3, atol=1e-3), (loss_b, ref_b)

    # --- check 3: forced multi-tile grid with a partial final tile ---
    Bm = 20
    e1m, e2m = emb_1[:8], emb_2[:8]
    e1m = jax.random.normal(k1, (Bm, D), dtype=jnp.float32)
    e2m = jax.random.normal(k2, (Bm, D), dtype=jnp.float32)
    labm = jax.random.bernoulli(k3, 0.5, (Bm,)).astype(jnp.float32)
    mk3 = jax.random.PRNGKey(11)
    loss_m = jax.block_until_ready(
        elasticface_loss(e1m, e2m, labm, s=s, m=m, std=std, margin_key=mk3,
                         tile_rows=8))
    margin_m = m + std * jax.random.normal(mk3, (Bm,), dtype=jnp.float32)
    ref_m = _reference_loss(e1m, e2m, labm, margin_m, s)
    assert jnp.allclose(loss_m, ref_m, rtol=1e-5, atol=1e-5), (loss_m, ref_m)

    print("KERNEL_OK")
</pallas_src>

<mosaic_0001>
module attributes {stable_mosaic.version = 11 : i64} {
  func.func @_elasticface_kernel(%arg0: i32, %arg1: memref<8x32xf32, #tpu.memory_space<vmem>>, %arg2: memref<8x32xf32, #tpu.memory_space<vmem>>, %arg3: memref<8x2xf32, #tpu.memory_space<vmem>>, %arg4: memref<1x128xf32, #tpu.memory_space<vmem>>) attributes {dimension_semantics = [#tpu.dimension_semantics<parallel>], iteration_bounds = array<i64: 1>, scalar_prefetch = 0 : i64, scratch_operands = 0 : i64, tpu.core_type = #tpu.core_type<tc>, window_params = [{transform_indices = @transform_0, window_bounds = array<i64: 8, 32>}, {transform_indices = @transform_1, window_bounds = array<i64: 8, 32>}, {transform_indices = @transform_2, window_bounds = array<i64: 8, 2>}, {transform_indices = @transform_3, window_bounds = array<i64: 1, 128>}]} {
    %c0 = arith.constant 0 : index
    %c0_0 = arith.constant 0 : index
    %0 = vector.load %arg3[%c0, %c0_0] : memref<8x2xf32, #tpu.memory_space<vmem>>, vector<8x1xf32>
    %c0_1 = arith.constant 0 : index
    %c1 = arith.constant 1 : index
    %1 = vector.load %arg3[%c0_1, %c1] : memref<8x2xf32, #tpu.memory_space<vmem>>, vector<8x1xf32>
    %cst = arith.constant 0.000000e+00 : f32
    %2 = vector.broadcast %cst : f32 to vector<8x1xf32>
    %cst_2 = arith.constant 0.000000e+00 : f32
    %3 = vector.broadcast %cst_2 : f32 to vector<8x1xf32>
    %cst_3 = arith.constant 0.000000e+00 : f32
    %4 = vector.broadcast %cst_3 : f32 to vector<8x1xf32>
    %c0_4 = arith.constant 0 : index
    %c0_5 = arith.constant 0 : index
    %5 = vector.load %arg1[%c0_4, %c0_5] : memref<8x32xf32, #tpu.memory_space<vmem>>, vector<8x32xf32>
    %c0_6 = arith.constant 0 : index
    %c0_7 = arith.constant 0 : index
    %6 = vector.load %arg2[%c0_6, %c0_7] : memref<8x32xf32, #tpu.memory_space<vmem>>, vector<8x32xf32>
    %7 = arith.mulf %5, %6 : vector<8x32xf32>
    %cst_8 = arith.constant dense<0.000000e+00> : vector<8xf32>
    %8 = vector.multi_reduction <add>, %7, %cst_8 [1] : vector<8x32xf32> to vector<8xf32>
    %9 = vector.shape_cast %8 : vector<8xf32> to vector<8x1xf32>
    %10 = arith.addf %2, %9 : vector<8x1xf32>
    %11 = arith.mulf %5, %5 : vector<8x32xf32>
    %cst_9 = arith.constant dense<0.000000e+00> : vector<8xf32>
    %12 = vector.multi_reduction <add>, %11, %cst_9 [1] : vector<8x32xf32> to vector<8xf32>
    %13 = vector.shape_cast %12 : vector<8xf32> to vector<8x1xf32>
    %14 = arith.addf %3, %13 : vector<8x1xf32>
    %15 = arith.mulf %6, %6 : vector<8x32xf32>
    %cst_10 = arith.constant dense<0.000000e+00> : vector<8xf32>
    %16 = vector.multi_reduction <add>, %15, %cst_10 [1] : vector<8x32xf32> to vector<8xf32>
    %17 = vector.shape_cast %16 : vector<8xf32> to vector<8x1xf32>
    %18 = arith.addf %4, %17 : vector<8x1xf32>
    %cst_11 = arith.constant 1.000000e-16 : f32
    %19 = vector.broadcast %cst_11 : f32 to vector<8x1xf32>
    %20 = arith.maximumf %14, %19 : vector<8x1xf32>
    %cst_12 = arith.constant 1.000000e-16 : f32
    %21 = vector.broadcast %cst_12 : f32 to vector<8x1xf32>
    %22 = arith.maximumf %18, %21 : vector<8x1xf32>
    %23 = arith.mulf %20, %22 : vector<8x1xf32>
    %24 = math.rsqrt %23 : vector<8x1xf32>
    %25 = arith.mulf %10, %24 : vector<8x1xf32>
    %26 = arith.subf %25, %1 : vector<8x1xf32>
    %cst_13 = arith.constant 6.400000e+01 : f32
    %27 = vector.broadcast %cst_13 : f32 to vector<8x1xf32>
    %28 = arith.mulf %27, %26 : vector<8x1xf32>
    %cst_14 = arith.constant 0.000000e+00 : f32
    %29 = vector.broadcast %cst_14 : f32 to vector<8x1xf32>
    %30 = arith.maximumf %28, %29 : vector<8x1xf32>
    %31 = arith.mulf %28, %0 : vector<8x1xf32>
    %32 = arith.subf %30, %31 : vector<8x1xf32>
    %33 = math.absf %28 : vector<8x1xf32>
    %cst_15 = arith.constant 0.000000e+00 : f32
    %34 = vector.broadcast %cst_15 : f32 to vector<8x1xf32>
    %35 = arith.subf %34, %33 : vector<8x1xf32>
    %36 = math.exp %35 : vector<8x1xf32>
    %37 = math.log1p %36 : vector<8x1xf32>
    %38 = arith.addf %32, %37 : vector<8x1xf32>
    %c8_i32 = arith.constant 8 : i32
    %39 = arith.muli %arg0, %c8_i32 : i32
    %40 = tpu.iota {dimensions = array<i32: 0>} : vector<8x1xi32>
    %41 = vector.broadcast %39 : i32 to vector<8x1xi32>
    %42 = arith.addi %41, %40 : vector<8x1xi32>
    %c8_i32_16 = arith.constant 8 : i32
    %43 = vector.broadcast %c8_i32_16 : i32 to vector<8x1xi32>
    %44 = arith.cmpi slt, %42, %43 : vector<8x1xi32>
    %cst_17 = arith.constant 0.000000e+00 : f32
    %45 = vector.broadcast %cst_17 : f32 to vector<8x1xf32>
    %46 = arith.select %44, %38, %45 : vector<8x1xi1>, vector<8x1xf32>
    %47 = vector.shape_cast %46 : vector<8x1xf32> to vector<1x8x1xf32>
    %cst_18 = arith.constant dense<0.000000e+00> : vector<1xf32>
    %48 = vector.multi_reduction <add>, %47, %cst_18 [1, 2] : vector<1x8x1xf32> to vector<1xf32>
    %49 = vector.shape_cast %48 : vector<1xf32> to vector<1x1x1xf32>
    %50 = vector.extract %49[0, 0, 0] : f32 from vector<1x1x1xf32>
    %51 = vector.broadcast %50 : f32 to vector<1x128xf32>
    %c0_19 = arith.constant 0 : index
    %c0_20 = arith.constant 0 : index
    %52 = vector.load %arg4[%c0_19, %c0_20] : memref<1x128xf32, #tpu.memory_space<vmem>>, vector<1x128xf32>
    tpu.vector_store %arg4[%c0_19, %c0_20], %51 {strides = array<i32>} : memref<1x128xf32, #tpu.memory_space<vmem>>, vector<1x128xf32>,
    return
  }
  func.func @transform_0(%arg0: i32) -> (i32, i32) {
    %c0_i32 = arith.constant 0 : i32
    %c0_i32_0 = arith.constant 0 : i32
    return %arg0, %c0_i32 : i32, i32
  }
  func.func @transform_1(%arg0: i32) -> (i32, i32) {
    %c0_i32 = arith.constant 0 : i32
    %c0_i32_0 = arith.constant 0 : i32
    return %arg0, %c0_i32 : i32, i32
  }
  func.func @transform_2(%arg0: i32) -> (i32, i32) {
    %c0_i32 = arith.constant 0 : i32
    %c0_i32_0 = arith.constant 0 : i32
    return %arg0, %c0_i32 : i32, i32
  }
  func.func @transform_3(%arg0: i32) -> (i32, i32) {
    %c0_i32 = arith.constant 0 : i32
    %c0_i32_0 = arith.constant 0 : i32
    return %c0_i32, %arg0 : i32, i32
  }
}

</mosaic_0001>

<llo_original>
// kernel: tpu_custom_call.1
$region0: #{tpu_custom_call.1}
  #allocation0 [shape = 'u32[]', space=smem, size = 0x4, offset = 0x4, fixed_abs, tag = 'smem constant byte address 0x4 - core index']
  #allocation1 [shape = 'u32[144,128]{1,0:T(1,128)}', space=vmem, size = 0x12000, scoped, tag = 'internal scratch']
  %s0 = inlined_call_operand.vmem [shape: f32[8,32], index: 0, kind: input, shape index: {}]
  %s1 = inlined_call_operand.hbm [shape: f32[8,32], index: 1, kind: input, shape index: {}]
  %s2 = inlined_call_operand.vmem [shape: f32[8,2], index: 2, kind: input, shape index: {}]
  %s3 = inlined_call_operand.hbm [shape: f32[1,128], index: 3, kind: output, shape index: {}]
  %s4 = sld [smem:[#allocation0]]
  $region26: #{tpu_custom_call.1} parent=0
    _
  %s6 = ssub.s32 1, %s4
  %s7 = scalar_select 0, %s6, %s4
  $region1: #{tpu_custom_call.1} parent=0
    #allocation2 [shape = 'u8[4096]{0}', space=vmem, size = 0x1000, scoped, tag = 'input window, operand 1, single buffered']
    #allocation3 [shape = 's32[1]{0}', space=sflag, size = 0x4, scoped, tag = 'scoped memory for tpu_custom_call.1']
    #allocation4 [shape = 's32[1]{0}', space=sflag, size = 0x4, scoped, tag = 'scoped memory for tpu_custom_call.1']
    #allocation5 [shape = 'u8[512]{0}', space=vmem, size = 0x400, scoped, tag = 'output window, operand 0, single buffered']
    %8 = vsyncpa [#allocation3], 0
    %9 = vsyncpa [#allocation4], 0
    // Predicated region
    $region2: #{tpu_custom_call.1} parent=1 // pred_check
      _
    $region3: #{tpu_custom_call.1} parent=1 // pred_check_branch
      %11 = sbr.rel (0) target = $region5
    $region4: #{tpu_custom_call.1} parent=1 // pred_region
      _
    $region5: #{tpu_custom_call.1} parent=1 // pred_fallthru
      _
    // Predicated region
    $region6: #{tpu_custom_call.1} parent=1 // pred_check
      _
    $region7: #{tpu_custom_call.1} parent=1 // pred_check_branch
      %13 = sbr.rel (0) target = $region9
    $region8: #{tpu_custom_call.1} parent=1 // pred_region
      %s15 = ssub.s32 128, 128
      %16 = vsyncadd [#allocation3], %s15
      %s18 = sshll.u32 [#allocation2], 4
      %s19 = int_to_ptr.vmem [resolvable:$true] %s18
      %21 = dma.hbm_to_vmem [thread:$0]  %s1, 128, %s19, [#allocation3]
    $region9: #{tpu_custom_call.1} parent=1 // pred_fallthru
      _
    // Predicated region
    $region10: #{tpu_custom_call.1} parent=1 // pred_check
      _
    $region11: #{tpu_custom_call.1} parent=1 // pred_check_branch
      %23 = sbr.rel (0) target = $region13
    $region12: #{tpu_custom_call.1} parent=1 // pred_region
      _
    $region13: #{tpu_custom_call.1} parent=1 // pred_fallthru
      _
    // Predicated region
    $region14: #{tpu_custom_call.1} parent=1 // pred_check
      _
    $region15: #{tpu_custom_call.1} parent=1 // pred_check_branch
      %25 = sbr.rel (0) target = $region17
    $region16: #{tpu_custom_call.1} parent=1 // pred_region
      %26 = dma.done [#allocation3], 128
    $region17: #{tpu_custom_call.1} parent=1 // pred_fallthru
      _
    %v27 = vld [vmem:[%s2] sm:$0xff]
    %v28 = vld [vmem:[%s0] sm:$0xff]
    %v29 = vld [vmem:[#allocation2] sm:$0xff]
    %v30 = vmul.f32 %v28, %v29
    %vm31 = vcmask 261120
    %v32 = vsel %vm31, %v30, 0.0
    %33 = vadd.xlane.f32.xlu0 %v32
    %v34 = vpop.xlane.xlu0 %33
    %v35 = vadd.f32 %v34, 0.0
    %v36 = vmul.f32 %v28, %v28
    %v37 = vsel %vm31, %v36, 0.0
    %38 = vadd.xlane.f32.xlu0 %v37
    %v39 = vpop.xlane.xlu0 %38
    %v40 = vadd.f32 %v39, 0.0
    %v41 = vmul.f32 %v29, %v29
    %v42 = vsel %vm31, %v41, 0.0
    %43 = vadd.xlane.f32.xlu0 %v42
    %v44 = vpop.xlane.xlu0 %43
    %v45 = vadd.f32 %v44, 0.0
    %v46 = vmax.f32 %v40, 1e-16
    %v47 = vmax.f32 %v45, 1e-16
    %v48 = vmul.f32 %v46, %v47
    %v49 = vrsqrt.pop %v48
    %v50 = vmul.f32 %v35, %v49
    %v51 = vsub.f32 %v50, %v27
    %v52 = vmul.f32 %v51, 64.0
    %v53 = vmax.f32 %v52, 0.0
    %55 = vrot.lane.b32.xlu0 %v27, 1
    %v56 = vpop.permute.xlu0 %55
    %v58 = vmul.f32 %v52, %v56
    %v59 = vsub.f32 %v53, %v58
    %v60 = vand.u32 2147483647, %v52
    %v61 = vsub.f32 0.0, %v60
    %v62 = vmul.f32 %v61, 1.442695
    %v63 = vpow.pop %v62
    %v64 = vadd.f32 %v63, 1.0
    %v65 = vlog2.pop %v64
    %v66 = vmul.f32 %v65, 0.6931472
    %v67 = vmul.f32 -0.5, %v63
    %v68 = vadd.f32 %v67, 1.0
    %v69 = vmul.f32 %v68, %v63
    %v70 = vand.u32 2147483647, %v63
    %vm71 = vcmp.lt.f32.partialorder %v70, 0.0004427343
    %v72 = vsel %vm71, %v69, %v66
    %v73 = vadd.f32 %v59, %v72
    %s74 = smul.u32 0, 8
    %v75 = vlaneseq
    %v76 = vshrl.u32 %v75, 7
    %v77 = vstv %s74
    %v78 = vadd.s32 %v77, %v76
    %vm79 = vcmp.lt.s32.totalorder %v78, 8
    %v80 = vsel %vm79, %v73, 0.0
    %82 = vrot.lane.b32.xlu0 %v80, 127
    %v83 = vpop.permute.xlu0 %82
    %vm85 = vcmask 7168
    %v86 = vsel %vm85, %v83, 0.0
    %87 = vadd.xlane.f32.xlu0 %v86
    %v88 = vpop.xlane.xlu0 %87
    %v89 = vrot.slane %v88, 4
    %v90 = vadd.f32 %v88, %v89
    %v91 = vrot.slane %v90, 2
    %v92 = vadd.f32 %v90, %v91
    %v93 = vrot.slane %v92, 1
    %v94 = vadd.f32 %v92, %v93
    %s95 = vtos %v94
    %v96 = vstv %s95
    %97 = vst [vmem:[#allocation5] sm:$0x1] %v96
    // Predicated region
    $region18: #{tpu_custom_call.1} parent=1 // pred_check
      _
    $region19: #{tpu_custom_call.1} parent=1 // pred_check_branch
      %99 = sbr.rel (0) target = $region21
    $region20: #{tpu_custom_call.1} parent=1 // pred_region
      %s101 = ssub.s32 16, 16
      %102 = vsyncadd [#allocation4], %s101
      %s104 = sshll.u32 [#allocation5], 4
      %s105 = int_to_ptr.vmem [resolvable:$true] %s104
      %107 = dma.vmem_to_hbm [thread:$0]  %s105, 16, %s3, [#allocation4]
    $region21: #{tpu_custom_call.1} parent=1 // pred_fallthru
      _
    // Predicated region
    $region22: #{tpu_custom_call.1} parent=1 // pred_check
      _
    $region23: #{tpu_custom_call.1} parent=1 // pred_check_branch
      %109 = sbr.rel (0) target = $region25
    $region24: #{tpu_custom_call.1} parent=1 // pred_region
      %110 = dma.done [#allocation4], 16
    $region25: #{tpu_custom_call.1} parent=1 // pred_fallthru
      _
    %111 = vsyncpa [#allocation3], 1
    %112 = vsyncpa [#allocation4], 1

</llo_original>
